<compile_context>
chip_gen: v6e
topology: v6e:2x2x1
jax: 0.10.0
libtpu: 0.0.40
codegen_flags: <defaults>
</compile_context>

<pallas_src>
import functools

import jax
import jax.numpy as jnp
from jax.experimental import pallas as pl
from jax.experimental.pallas import tpu as pltpu

NEG_LARGE = -1e30   # fill for padded logit lanes (exp -> 0 under log_softmax); f32 only
OUT_PAD = 128       # lane-dense output width (real classes = 10)
IN_DIM = 28 * 28


def mlp_kernel(x_ref, w1_ref, b1_ref, w2_ref, b2_ref,
               w3_ref, b3_ref, w4_ref, b4_ref, o_ref):
    # x arrives as f32 straight from HBM (no separate wrapper cast pass); one in-VMEM
    # cast to bf16 feeds the MXU at native rate.
    x = x_ref[...].astype(jnp.bfloat16)
    # fc1 + relu  (bf16 in, f32 accumulate, f32 bias/ReLU, bf16 back for next dot)
    h = jnp.dot(x, w1_ref[...], preferred_element_type=jnp.float32) + b1_ref[...]
    h = jnp.maximum(h, 0.0).astype(jnp.bfloat16)
    # fc2 + relu
    h = jnp.dot(h, w2_ref[...], preferred_element_type=jnp.float32) + b2_ref[...]
    h = jnp.maximum(h, 0.0).astype(jnp.bfloat16)
    # fc3 + relu
    h = jnp.dot(h, w3_ref[...], preferred_element_type=jnp.float32) + b3_ref[...]
    h = jnp.maximum(h, 0.0).astype(jnp.bfloat16)
    # fc4 -> padded (tile_b, 128) logits slab. Pad lanes carry ~NEG_LARGE (kept in f32!)
    # so they contribute exp(...) == 0 to the log_softmax denominator.
    logits = jnp.dot(h, w4_ref[...], preferred_element_type=jnp.float32) + b4_ref[...]
    # log_softmax over the feature axis (f32, numerically stabilized).
    m = jnp.max(logits, axis=1, keepdims=True)
    shifted = logits - m
    lse = jnp.log(jnp.sum(jnp.exp(shifted), axis=1, keepdims=True))
    # Store bf16 to halve output HBM bytes; -1e30-ish pad values stay finite in bf16.
    o_ref[...] = (shifted - lse).astype(jnp.bfloat16)


def _choose_tile(batch, tile_b):
    """Batch tile: multiple of 8 sublanes, <= padded batch, and (whenever the batch
    allows it) small enough to yield >= 2 grid steps so both v7x TensorCores get work
    under dimension_semantics=('parallel',)."""
    b8 = ((batch + 7) // 8) * 8
    tile_b = max(8, (tile_b // 8) * 8)
    tile_b = min(tile_b, b8)
    half = ((b8 // 2) // 8) * 8
    if half >= 8:
        tile_b = min(tile_b, half)
    b_pad = ((batch + tile_b - 1) // tile_b) * tile_b
    return tile_b, b_pad


@functools.partial(jax.jit, static_argnames=("tile_b",))
def mlp_forward(x, kparams, *, tile_b=2048):
    """x: (B, 784) float32. kparams: kernel-ready params (bf16 weights, padded fc4).
    Returns (B, 10) float32 log-probabilities."""
    B, D = x.shape
    assert D == IN_DIM
    tb, b_pad = _choose_tile(B, tile_b)
    x_p = x if b_pad == B else jnp.pad(x, ((0, b_pad - B), (0, 0)))

    def resident(arr):
        # Constant index map -> single block, stays VMEM-resident across all batch tiles.
        return pl.BlockSpec(arr.shape, lambda i: (0, 0))

    out = pl.pallas_call(
        mlp_kernel,
        out_shape=jax.ShapeDtypeStruct((b_pad, OUT_PAD), jnp.bfloat16),
        grid=(b_pad // tb,),
        in_specs=[
            pl.BlockSpec((tb, IN_DIM), lambda i: (i, 0)),        # f32 x tile streams
            resident(kparams["w1"]), resident(kparams["b1"]),
            resident(kparams["w2"]), resident(kparams["b2"]),
            resident(kparams["w3"]), resident(kparams["b3"]),
            resident(kparams["w4"]), resident(kparams["b4"]),
        ],
        out_specs=pl.BlockSpec((tb, OUT_PAD), lambda i: (i, 0)),
        compiler_params=pltpu.CompilerParams(
            dimension_semantics=("parallel",),   # shard batch tiles across TCs (v7x)
            # No vmem_limit_bytes: default scoped VMEM (32 MiB) comfortably fits the
            # double-buffered tile footprint on v5e/v6e/v7x.
        ),
    )(x_p,
      kparams["w1"], kparams["b1"],
      kparams["w2"], kparams["b2"],
      kparams["w3"], kparams["b3"],
      kparams["w4"], kparams["b4"])
    return out[:B, :10].astype(jnp.float32)


def init_params(key):
    """Deterministic f32 init mimicking nn.Linear's U(-1/sqrt(fan_in), 1/sqrt(fan_in)).
    Weights stored pre-transposed as (in_features, out_features)."""
    dims = [(IN_DIM, 64), (64, 64), (64, 64), (64, 10)]
    params = {}
    keys = jax.random.split(key, 2 * len(dims))
    for i, (fin, fout) in enumerate(dims):
        bound = 1.0 / jnp.sqrt(jnp.float32(fin))
        params[f"w{i + 1}"] = jax.random.uniform(keys[2 * i], (fin, fout), jnp.float32, -bound, bound)
        params[f"b{i + 1}"] = jax.random.uniform(keys[2 * i + 1], (1, fout), jnp.float32, -bound, bound)
    return params


def prepare_kernel_params(params):
    """Cast weights to bf16 (biases stay f32) and pad fc4 to a lane-dense 128 width.
    b4/logits must stay f32 so the -1e30 pad bias does not become -inf."""
    kp = {
        "w1": params["w1"].astype(jnp.bfloat16),
        "w2": params["w2"].astype(jnp.bfloat16),
        "w3": params["w3"].astype(jnp.bfloat16),
        "b1": params["b1"],
        "b2": params["b2"],
        "b3": params["b3"],
    }
    w4 = params["w4"]  # (64, 10)
    b4 = params["b4"]  # (1, 10)
    pad = OUT_PAD - w4.shape[1]
    kp["w4"] = jnp.pad(w4, ((0, 0), (0, pad))).astype(jnp.bfloat16)
    kp["b4"] = jnp.pad(b4, ((0, 0), (0, pad)), constant_values=NEG_LARGE)
    return kp


def mlp_reference(x, params):
    """Pure-JAX f32 reference for correctness checking."""
    h = jnp.maximum(x @ params["w1"] + params["b1"], 0.0)
    h = jnp.maximum(h @ params["w2"] + params["b2"], 0.0)
    h = jnp.maximum(h @ params["w3"] + params["b3"], 0.0)
    logits = h @ params["w4"] + params["b4"]
    return jax.nn.log_softmax(logits, axis=1)


if __name__ == "__main__":
    key = jax.random.PRNGKey(0)
    kx, kp = jax.random.split(key)
    B = 8
    x = jax.random.normal(kx, (B, IN_DIM), jnp.float32)

    params = init_params(kp)
    kparams = prepare_kernel_params(params)

    out = mlp_forward(x, kparams)
    out = jax.block_until_ready(out)

    ref = mlp_reference(x, params)
    assert out.shape == (B, 10)
    # bf16 weights/activations/output -> compare against f32 reference at a loose tolerance.
    assert jnp.allclose(out, ref, atol=1e-1, rtol=1e-1), float(jnp.max(jnp.abs(out - ref)))
    print("KERNEL_OK")
</pallas_src>

<mosaic_0001>
module attributes {stable_mosaic.version = 11 : i64} {
  func.func @mlp_kernel(%arg0: i32, %arg1: memref<8x784xf32, #tpu.memory_space<vmem>>, %arg2: memref<784x64xbf16, #tpu.memory_space<vmem>>, %arg3: memref<1x64xf32, #tpu.memory_space<vmem>>, %arg4: memref<64x64xbf16, #tpu.memory_space<vmem>>, %arg5: memref<1x64xf32, #tpu.memory_space<vmem>>, %arg6: memref<64x64xbf16, #tpu.memory_space<vmem>>, %arg7: memref<1x64xf32, #tpu.memory_space<vmem>>, %arg8: memref<64x128xbf16, #tpu.memory_space<vmem>>, %arg9: memref<1x128xf32, #tpu.memory_space<vmem>>, %arg10: memref<8x128xbf16, #tpu.memory_space<vmem>>) attributes {dimension_semantics = [#tpu.dimension_semantics<parallel>], iteration_bounds = array<i64: 1>, scalar_prefetch = 0 : i64, scratch_operands = 0 : i64, tpu.core_type = #tpu.core_type<tc>, window_params = [{transform_indices = @transform_0, window_bounds = array<i64: 8, 784>}, {pipeline_mode = #tpu.pipeline_mode<synchronous>, transform_indices = @transform_1, window_bounds = array<i64: 784, 64>}, {pipeline_mode = #tpu.pipeline_mode<synchronous>, transform_indices = @transform_2, window_bounds = array<i64: 1, 64>}, {pipeline_mode = #tpu.pipeline_mode<synchronous>, transform_indices = @transform_3, window_bounds = array<i64: 64, 64>}, {pipeline_mode = #tpu.pipeline_mode<synchronous>, transform_indices = @transform_4, window_bounds = array<i64: 1, 64>}, {pipeline_mode = #tpu.pipeline_mode<synchronous>, transform_indices = @transform_5, window_bounds = array<i64: 64, 64>}, {pipeline_mode = #tpu.pipeline_mode<synchronous>, transform_indices = @transform_6, window_bounds = array<i64: 1, 64>}, {pipeline_mode = #tpu.pipeline_mode<synchronous>, transform_indices = @transform_7, window_bounds = array<i64: 64, 128>}, {pipeline_mode = #tpu.pipeline_mode<synchronous>, transform_indices = @transform_8, window_bounds = array<i64: 1, 128>}, {transform_indices = @transform_9, window_bounds = array<i64: 8, 128>}]} {
    %c0 = arith.constant 0 : index
    %c0_0 = arith.constant 0 : index
    %0 = vector.load %arg1[%c0, %c0_0] : memref<8x784xf32, #tpu.memory_space<vmem>>, vector<8x784xf32>
    %1 = arith.truncf %0 : vector<8x784xf32> to vector<8x784xbf16>
    %c0_1 = arith.constant 0 : index
    %c0_2 = arith.constant 0 : index
    %2 = vector.load %arg2[%c0_1, %c0_2] : memref<784x64xbf16, #tpu.memory_space<vmem>>, vector<784x64xbf16>
    %cst = arith.constant dense<0.000000e+00> : vector<8x64xf32>
    %3 = tpu.matmul %1, %2, %cst {dimension_numbers = #tpu.dot_dimension_numbers<[1], [0], [0], [1], [0, 0, 1, 1], [], []>} : vector<8x784xbf16>, vector<784x64xbf16>, vector<8x64xf32> -> vector<8x64xf32>
    %c0_3 = arith.constant 0 : index
    %c0_4 = arith.constant 0 : index
    %4 = vector.load %arg3[%c0_3, %c0_4] : memref<1x64xf32, #tpu.memory_space<vmem>>, vector<1x64xf32>
    %5 = vector.broadcast %4 : vector<1x64xf32> to vector<8x64xf32>
    %6 = arith.addf %3, %5 : vector<8x64xf32>
    %cst_5 = arith.constant 0.000000e+00 : f32
    %7 = vector.broadcast %cst_5 : f32 to vector<8x64xf32>
    %8 = arith.maximumf %6, %7 : vector<8x64xf32>
    %9 = arith.truncf %8 : vector<8x64xf32> to vector<8x64xbf16>
    %c0_6 = arith.constant 0 : index
    %c0_7 = arith.constant 0 : index
    %10 = vector.load %arg4[%c0_6, %c0_7] : memref<64x64xbf16, #tpu.memory_space<vmem>>, vector<64x64xbf16>
    %cst_8 = arith.constant dense<0.000000e+00> : vector<8x64xf32>
    %11 = tpu.matmul %9, %10, %cst_8 {dimension_numbers = #tpu.dot_dimension_numbers<[1], [0], [0], [1], [0, 0, 1, 1], [], []>} : vector<8x64xbf16>, vector<64x64xbf16>, vector<8x64xf32> -> vector<8x64xf32>
    %c0_9 = arith.constant 0 : index
    %c0_10 = arith.constant 0 : index
    %12 = vector.load %arg5[%c0_9, %c0_10] : memref<1x64xf32, #tpu.memory_space<vmem>>, vector<1x64xf32>
    %13 = vector.broadcast %12 : vector<1x64xf32> to vector<8x64xf32>
    %14 = arith.addf %11, %13 : vector<8x64xf32>
    %cst_11 = arith.constant 0.000000e+00 : f32
    %15 = vector.broadcast %cst_11 : f32 to vector<8x64xf32>
    %16 = arith.maximumf %14, %15 : vector<8x64xf32>
    %17 = arith.truncf %16 : vector<8x64xf32> to vector<8x64xbf16>
    %c0_12 = arith.constant 0 : index
    %c0_13 = arith.constant 0 : index
    %18 = vector.load %arg6[%c0_12, %c0_13] : memref<64x64xbf16, #tpu.memory_space<vmem>>, vector<64x64xbf16>
    %cst_14 = arith.constant dense<0.000000e+00> : vector<8x64xf32>
    %19 = tpu.matmul %17, %18, %cst_14 {dimension_numbers = #tpu.dot_dimension_numbers<[1], [0], [0], [1], [0, 0, 1, 1], [], []>} : vector<8x64xbf16>, vector<64x64xbf16>, vector<8x64xf32> -> vector<8x64xf32>
    %c0_15 = arith.constant 0 : index
    %c0_16 = arith.constant 0 : index
    %20 = vector.load %arg7[%c0_15, %c0_16] : memref<1x64xf32, #tpu.memory_space<vmem>>, vector<1x64xf32>
    %21 = vector.broadcast %20 : vector<1x64xf32> to vector<8x64xf32>
    %22 = arith.addf %19, %21 : vector<8x64xf32>
    %cst_17 = arith.constant 0.000000e+00 : f32
    %23 = vector.broadcast %cst_17 : f32 to vector<8x64xf32>
    %24 = arith.maximumf %22, %23 : vector<8x64xf32>
    %25 = arith.truncf %24 : vector<8x64xf32> to vector<8x64xbf16>
    %c0_18 = arith.constant 0 : index
    %c0_19 = arith.constant 0 : index
    %26 = vector.load %arg8[%c0_18, %c0_19] : memref<64x128xbf16, #tpu.memory_space<vmem>>, vector<64x128xbf16>
    %cst_20 = arith.constant dense<0.000000e+00> : vector<8x128xf32>
    %27 = tpu.matmul %25, %26, %cst_20 {dimension_numbers = #tpu.dot_dimension_numbers<[1], [0], [0], [1], [0, 0, 1, 1], [], []>} : vector<8x64xbf16>, vector<64x128xbf16>, vector<8x128xf32> -> vector<8x128xf32>
    %c0_21 = arith.constant 0 : index
    %c0_22 = arith.constant 0 : index
    %28 = vector.load %arg9[%c0_21, %c0_22] : memref<1x128xf32, #tpu.memory_space<vmem>>, vector<1x128xf32>
    %29 = vector.broadcast %28 : vector<1x128xf32> to vector<8x128xf32>
    %30 = arith.addf %27, %29 : vector<8x128xf32>
    %cst_23 = arith.constant dense<0xFF800000> : vector<8xf32>
    %31 = vector.multi_reduction <maximumf>, %30, %cst_23 [1] : vector<8x128xf32> to vector<8xf32>
    %32 = vector.shape_cast %31 : vector<8xf32> to vector<8x1xf32>
    %33 = vector.broadcast %32 : vector<8x1xf32> to vector<8x128xf32>
    %34 = arith.subf %30, %33 : vector<8x128xf32>
    %35 = math.exp %34 : vector<8x128xf32>
    %cst_24 = arith.constant dense<0.000000e+00> : vector<8xf32>
    %36 = vector.multi_reduction <add>, %35, %cst_24 [1] : vector<8x128xf32> to vector<8xf32>
    %37 = vector.shape_cast %36 : vector<8xf32> to vector<8x1xf32>
    %38 = math.log %37 : vector<8x1xf32>
    %39 = vector.broadcast %38 : vector<8x1xf32> to vector<8x128xf32>
    %40 = arith.subf %34, %39 : vector<8x128xf32>
    %41 = arith.truncf %40 : vector<8x128xf32> to vector<8x128xbf16>
    %c0_25 = arith.constant 0 : index
    %c0_26 = arith.constant 0 : index
    %42 = vector.load %arg10[%c0_25, %c0_26] : memref<8x128xbf16, #tpu.memory_space<vmem>>, vector<8x128xbf16>
    tpu.vector_store %arg10[%c0_25, %c0_26], %41 {strides = array<i32>} : memref<8x128xbf16, #tpu.memory_space<vmem>>, vector<8x128xbf16>,
    return
  }
  func.func @transform_0(%arg0: i32) -> (i32, i32) {
    %c0_i32 = arith.constant 0 : i32
    %c0_i32_0 = arith.constant 0 : i32
    return %arg0, %c0_i32 : i32, i32
  }
  func.func @transform_1(%arg0: i32) -> (i32, i32) {
    %c0_i32 = arith.constant 0 : i32
    %c0_i32_0 = arith.constant 0 : i32
    %c0_i32_1 = arith.constant 0 : i32
    return %c0_i32, %c0_i32_0 : i32, i32
  }
  func.func @transform_2(%arg0: i32) -> (i32, i32) {
    %c0_i32 = arith.constant 0 : i32
    %c0_i32_0 = arith.constant 0 : i32
    %c0_i32_1 = arith.constant 0 : i32
    return %c0_i32, %c0_i32_0 : i32, i32
  }
  func.func @transform_3(%arg0: i32) -> (i32, i32) {
    %c0_i32 = arith.constant 0 : i32
    %c0_i32_0 = arith.constant 0 : i32
    %c0_i32_1 = arith.constant 0 : i32
    return %c0_i32, %c0_i32_0 : i32, i32
  }
  func.func @transform_4(%arg0: i32) -> (i32, i32) {
    %c0_i32 = arith.constant 0 : i32
    %c0_i32_0 = arith.constant 0 : i32
    %c0_i32_1 = arith.constant 0 : i32
    return %c0_i32, %c0_i32_0 : i32, i32
  }
  func.func @transform_5(%arg0: i32) -> (i32, i32) {
    %c0_i32 = arith.constant 0 : i32
    %c0_i32_0 = arith.constant 0 : i32
    %c0_i32_1 = arith.constant 0 : i32
    return %c0_i32, %c0_i32_0 : i32, i32
  }
  func.func @transform_6(%arg0: i32) -> (i32, i32) {
    %c0_i32 = arith.constant 0 : i32
    %c0_i32_0 = arith.constant 0 : i32
    %c0_i32_1 = arith.constant 0 : i32
    return %c0_i32, %c0_i32_0 : i32, i32
  }
  func.func @transform_7(%arg0: i32) -> (i32, i32) {
    %c0_i32 = arith.constant 0 : i32
    %c0_i32_0 = arith.constant 0 : i32
    %c0_i32_1 = arith.constant 0 : i32
    return %c0_i32, %c0_i32_0 : i32, i32
  }
  func.func @transform_8(%arg0: i32) -> (i32, i32) {
    %c0_i32 = arith.constant 0 : i32
    %c0_i32_0 = arith.constant 0 : i32
    %c0_i32_1 = arith.constant 0 : i32
    return %c0_i32, %c0_i32_0 : i32, i32
  }
  func.func @transform_9(%arg0: i32) -> (i32, i32) {
    %c0_i32 = arith.constant 0 : i32
    %c0_i32_0 = arith.constant 0 : i32
    return %arg0, %c0_i32 : i32, i32
  }
}

</mosaic_0001>

<llo_original>
// kernel: mlp_forward.1
$region0: #{mlp_forward.1}
  #allocation0 [shape = 'u32[]', space=smem, size = 0x4, offset = 0x4, fixed_abs, tag = 'smem constant byte address 0x4 - core index']
  #allocation1 [shape = 'u32[144,128]{1,0:T(1,128)}', space=vmem, size = 0x12000, scoped, tag = 'internal scratch']
  %s0 = inlined_call_operand.vmem [shape: f32[8,784], index: 0, kind: input, shape index: {}]
  %s1 = inlined_call_operand.vmem [shape: bf16[784,64], index: 1, kind: input, shape index: {}]
  %s2 = inlined_call_operand.vmem [shape: f32[1,64], index: 2, kind: input, shape index: {}]
  %s3 = inlined_call_operand.vmem [shape: bf16[64,64], index: 3, kind: input, shape index: {}]
  %s4 = inlined_call_operand.vmem [shape: f32[1,64], index: 4, kind: input, shape index: {}]
  %s5 = inlined_call_operand.vmem [shape: bf16[64,64], index: 5, kind: input, shape index: {}]
  %s6 = inlined_call_operand.vmem [shape: f32[1,64], index: 6, kind: input, shape index: {}]
  %s7 = inlined_call_operand.vmem [shape: bf16[64,128], index: 7, kind: input, shape index: {}]
  %s8 = inlined_call_operand.vmem [shape: f32[1,128], index: 8, kind: input, shape index: {}]
  %s9 = inlined_call_operand.vmem [shape: bf16[8,128], index: 9, kind: output, shape index: {}]
  %s10 = sld [smem:[#allocation0]]
  $region46: #{mlp_forward.1} parent=0
    _
  %s12 = ssub.s32 1, %s10
  %s13 = scalar_select 0, %s12, %s10
  // Predicated region
  $region2: #{mlp_forward.1} parent=0 // pred_check
    _
  $region3: #{mlp_forward.1} parent=0 // pred_check_branch
    %15 = sbr.rel (0) target = $region5
  $region4: #{mlp_forward.1} parent=0 // pred_region
    _
  $region5: #{mlp_forward.1} parent=0 // pred_fallthru
    _
  // Predicated region
  $region6: #{mlp_forward.1} parent=0 // pred_check
    _
  $region7: #{mlp_forward.1} parent=0 // pred_check_branch
    %17 = sbr.rel (0) target = $region9
  $region8: #{mlp_forward.1} parent=0 // pred_region
    _
  $region9: #{mlp_forward.1} parent=0 // pred_fallthru
    _
  // Predicated region
  $region10: #{mlp_forward.1} parent=0 // pred_check
    _
  $region11: #{mlp_forward.1} parent=0 // pred_check_branch
    %19 = sbr.rel (0) target = $region13
  $region12: #{mlp_forward.1} parent=0 // pred_region
    _
  $region13: #{mlp_forward.1} parent=0 // pred_fallthru
    _
  // Predicated region
  $region14: #{mlp_forward.1} parent=0 // pred_check
    _
  $region15: #{mlp_forward.1} parent=0 // pred_check_branch
    %21 = sbr.rel (0) target = $region17
  $region16: #{mlp_forward.1} parent=0 // pred_region
    _
  $region17: #{mlp_forward.1} parent=0 // pred_fallthru
    _
  // Predicated region
  $region18: #{mlp_forward.1} parent=0 // pred_check
    _
  $region19: #{mlp_forward.1} parent=0 // pred_check_branch
    %23 = sbr.rel (0) target = $region21
  $region20: #{mlp_forward.1} parent=0 // pred_region
    _
  $region21: #{mlp_forward.1} parent=0 // pred_fallthru
    _
  // Predicated region
  $region22: #{mlp_forward.1} parent=0 // pred_check
    _
  $region23: #{mlp_forward.1} parent=0 // pred_check_branch
    %25 = sbr.rel (0) target = $region25
  $region24: #{mlp_forward.1} parent=0 // pred_region
    _
  $region25: #{mlp_forward.1} parent=0 // pred_fallthru
    _
  // Predicated region
  $region26: #{mlp_forward.1} parent=0 // pred_check
    _
  $region27: #{mlp_forward.1} parent=0 // pred_check_branch
    %27 = sbr.rel (0) target = $region29
  $region28: #{mlp_forward.1} parent=0 // pred_region
    _
  $region29: #{mlp_forward.1} parent=0 // pred_fallthru
    _
  // Predicated region
  $region30: #{mlp_forward.1} parent=0 // pred_check
    _
  $region31: #{mlp_forward.1} parent=0 // pred_check_branch
    %29 = sbr.rel (0) target = $region33
  $region32: #{mlp_forward.1} parent=0 // pred_region
    _
  $region33: #{mlp_forward.1} parent=0 // pred_fallthru
    _
  // Predicated region
  $region34: #{mlp_forward.1} parent=0 // pred_check
    _
  $region35: #{mlp_forward.1} parent=0 // pred_check_branch
    %31 = sbr.rel (0) target = $region37
  $region36: #{mlp_forward.1} parent=0 // pred_region
    _
  $region37: #{mlp_forward.1} parent=0 // pred_fallthru
    _
  %v33 = vld [vmem:[%s0] sm:$0xff]
  %v34 = vld [vmem:[%s0 + $0x8] sm:$0xff]
  %v35 = vld [vmem:[%s0 + $0x10] sm:$0xff]
  %v36 = vld [vmem:[%s0 + $0x18] sm:$0xff]
  %v37 = vld [vmem:[%s0 + $0x20] sm:$0xff]
  %v38 = vld [vmem:[%s0 + $0x28] sm:$0xff]
  %v39 = vld [vmem:[%s0 + $0x30] sm:$0xff]
  %v40 = vpack.c.bf16 %v33, %v33
  %v41 = vpack.c.bf16 %v34, %v34
  %v42 = vpack.c.bf16 %v35, %v35
  %v43 = vpack.c.bf16 %v36, %v36
  %v44 = vpack.c.bf16 %v37, %v37
  %v45 = vpack.c.bf16 %v38, %v38
  %v46 = vpack.c.bf16 %v39, %v39
  %v47 = vld [vmem:[%s1] sm:$0xf]
  %v48 = vld [vmem:[%s1 + $0x4] sm:$0xf]
  %v49 = vld [vmem:[%s1 + $0x8] sm:$0xf]
  %v50 = vld [vmem:[%s1 + $0xc] sm:$0xf]
  %v51 = vld [vmem:[%s1 + $0x10] sm:$0xf]
  %v52 = vld [vmem:[%s1 + $0x14] sm:$0xf]
  %v53 = vld [vmem:[%s1 + $0x18] sm:$0xf]
  %v54 = vld [vmem:[%s1 + $0x1c] sm:$0xf]
  %v55 = vld [vmem:[%s1 + $0x20] sm:$0xf]
  %v56 = vld [vmem:[%s1 + $0x24] sm:$0xf]
  %v57 = vld [vmem:[%s1 + $0x28] sm:$0xf]
  %v58 = vld [vmem:[%s1 + $0x2c] sm:$0xf]
  %v59 = vld [vmem:[%s1 + $0x30] sm:$0xf]
  %v60 = vld [vmem:[%s1 + $0x34] sm:$0xf]
  %v61 = vld [vmem:[%s1 + $0x38] sm:$0xf]
  %v62 = vld [vmem:[%s1 + $0x3c] sm:$0xf]
  %v63 = vld [vmem:[%s1 + $0x40] sm:$0xf]
  %v64 = vld [vmem:[%s1 + $0x44] sm:$0xf]
  %v65 = vld [vmem:[%s1 + $0x48] sm:$0xf]
  %v66 = vld [vmem:[%s1 + $0x4c] sm:$0xf]
  %v67 = vld [vmem:[%s1 + $0x50] sm:$0xf]
  %v68 = vld [vmem:[%s1 + $0x54] sm:$0xf]
  %v69 = vld [vmem:[%s1 + $0x58] sm:$0xf]
  %v70 = vld [vmem:[%s1 + $0x5c] sm:$0xf]
  %v71 = vld [vmem:[%s1 + $0x60] sm:$0xf]
  %v72 = vld [vmem:[%s1 + $0x64] sm:$0xf]
  %v73 = vld [vmem:[%s1 + $0x68] sm:$0xf]
  %v74 = vld [vmem:[%s1 + $0x6c] sm:$0xf]
  %v75 = vld [vmem:[%s1 + $0x70] sm:$0xf]
  %v76 = vld [vmem:[%s1 + $0x74] sm:$0xf]
  %v77 = vld [vmem:[%s1 + $0x78] sm:$0xf]
  %v78 = vld [vmem:[%s1 + $0x7c] sm:$0xf]
  %v79 = vld [vmem:[%s1 + $0x80] sm:$0xf]
  %v80 = vld [vmem:[%s1 + $0x84] sm:$0xf]
  %v81 = vld [vmem:[%s1 + $0x88] sm:$0xf]
  %v82 = vld [vmem:[%s1 + $0x8c] sm:$0xf]
  %v83 = vld [vmem:[%s1 + $0x90] sm:$0xf]
  %v84 = vld [vmem:[%s1 + $0x94] sm:$0xf]
  %v85 = vld [vmem:[%s1 + $0x98] sm:$0xf]
  %v86 = vld [vmem:[%s1 + $0x9c] sm:$0xf]
  %v87 = vld [vmem:[%s1 + $0xa0] sm:$0xf]
  %v88 = vld [vmem:[%s1 + $0xa4] sm:$0xf]
  %v89 = vld [vmem:[%s1 + $0xa8] sm:$0xf]
  %v90 = vld [vmem:[%s1 + $0xac] sm:$0xf]
  %v91 = vld [vmem:[%s1 + $0xb0] sm:$0xf]
  %v92 = vld [vmem:[%s1 + $0xb4] sm:$0xf]
  %v93 = vld [vmem:[%s1 + $0xb8] sm:$0xf]
  %v94 = vld [vmem:[%s1 + $0xbc] sm:$0xf]
  %v95 = vld [vmem:[%s1 + $0xc0] sm:$0xf]
  %v96 = vld [vmem:[%s1 + $0xc4] sm:$0xf]
  %v97 = vld [vmem:[%s1 + $0xc8] sm:$0xf]
  %v98 = vld [vmem:[%s1 + $0xcc] sm:$0xf]
  %v99 = vld [vmem:[%s1 + $0xd0] sm:$0xf]
  %v100 = vld [vmem:[%s1 + $0xd4] sm:$0xf]
  %v101 = vld [vmem:[%s1 + $0xd8] sm:$0xf]
  %v102 = vld [vmem:[%s1 + $0xdc] sm:$0xf]
  %v103 = vld [vmem:[%s1 + $0xe0] sm:$0xf]
  %v104 = vld [vmem:[%s1 + $0xe4] sm:$0xf]
  %v105 = vld [vmem:[%s1 + $0xe8] sm:$0xf]
  %v106 = vld [vmem:[%s1 + $0xec] sm:$0xf]
  %v107 = vld [vmem:[%s1 + $0xf0] sm:$0xf]
  %v108 = vld [vmem:[%s1 + $0xf4] sm:$0xf]
  %v109 = vld [vmem:[%s1 + $0xf8] sm:$0xf]
  %v110 = vld [vmem:[%s1 + $0xfc] sm:$0xf]
  %v111 = vld [vmem:[%s1 + $0x100] sm:$0xf]
  %v112 = vld [vmem:[%s1 + $0x104] sm:$0xf]
  %v113 = vld [vmem:[%s1 + $0x108] sm:$0xf]
  %v114 = vld [vmem:[%s1 + $0x10c] sm:$0xf]
  %v115 = vld [vmem:[%s1 + $0x110] sm:$0xf]
  %v116 = vld [vmem:[%s1 + $0x114] sm:$0xf]
  %v117 = vld [vmem:[%s1 + $0x118] sm:$0xf]
  %v118 = vld [vmem:[%s1 + $0x11c] sm:$0xf]
  %v119 = vld [vmem:[%s1 + $0x120] sm:$0xf]
  %v120 = vld [vmem:[%s1 + $0x124] sm:$0xf]
  %v121 = vld [vmem:[%s1 + $0x128] sm:$0xf]
  %v122 = vld [vmem:[%s1 + $0x12c] sm:$0xf]
  %v123 = vld [vmem:[%s1 + $0x130] sm:$0xf]
  %v124 = vld [vmem:[%s1 + $0x134] sm:$0xf]
  %v125 = vld [vmem:[%s1 + $0x138] sm:$0xf]
  %v126 = vld [vmem:[%s1 + $0x13c] sm:$0xf]
  %v127 = vld [vmem:[%s1 + $0x140] sm:$0xf]
  %v128 = vld [vmem:[%s1 + $0x144] sm:$0xf]
  %v129 = vld [vmem:[%s1 + $0x148] sm:$0xf]
  %v130 = vld [vmem:[%s1 + $0x14c] sm:$0xf]
  %v131 = vld [vmem:[%s1 + $0x150] sm:$0xf]
  %v132 = vld [vmem:[%s1 + $0x154] sm:$0xf]
  %v133 = vld [vmem:[%s1 + $0x158] sm:$0xf]
  %v134 = vld [vmem:[%s1 + $0x15c] sm:$0xf]
  %v135 = vld [vmem:[%s1 + $0x160] sm:$0xf]
  %v136 = vld [vmem:[%s1 + $0x164] sm:$0xf]
  %v137 = vld [vmem:[%s1 + $0x168] sm:$0xf]
  %v138 = vld [vmem:[%s1 + $0x16c] sm:$0xf]
  %v139 = vld [vmem:[%s1 + $0x170] sm:$0xf]
  %v140 = vld [vmem:[%s1 + $0x174] sm:$0xf]
  %v141 = vld [vmem:[%s1 + $0x178] sm:$0xf]
  %v142 = vld [vmem:[%s1 + $0x17c] sm:$0xf]
  %v143 = vld [vmem:[%s1 + $0x180] sm:$0xf]
  %v144 = vld [vmem:[%s1 + $0x184] sm:$0xf]
  %v145 = vld [vmem:[%s2] sm:$0x1]
  %v147 = vlaneseq
  %v148 = vshrl.u32 %v147, 7
  %v149 = vsub.s32 0, %v148
  %v150 = vrot.slane %v145, %v149
  %v250 = vunpack.c.l.b16 %v47
  %v251 = vunpack.c.l.b16 %v48
  %v252 = vunpack.c.l.b16 %v49
  %v253 = vunpack.c.l.b16 %v50
  %v254 = vunpack.c.l.b16 %v51
  %v255 = vunpack.c.l.b16 %v52
  %v256 = vunpack.c.l.b16 %v53
  %v257 = vunpack.c.l.b16 %v54
  %v258 = vunpack.c.l.b16 %v55
  %v259 = vunpack.c.l.b16 %v56
  %v260 = vunpack.c.l.b16 %v57
  %v261 = vunpack.c.l.b16 %v58
  %v262 = vunpack.c.l.b16 %v59
  %v263 = vunpack.c.l.b16 %v60
  %v264 = vunpack.c.l.b16 %v61
  %v265 = vunpack.c.l.b16 %v62
  %v266 = vunpack.c.l.b16 %v63
  %v267 = vunpack.c.l.b16 %v64
  %v268 = vunpack.c.l.b16 %v65
  %v269 = vunpack.c.l.b16 %v66
  %v270 = vunpack.c.l.b16 %v67
  %v271 = vunpack.c.l.b16 %v68
  %v272 = vunpack.c.l.b16 %v69
  %v273 = vunpack.c.l.b16 %v70
  %v274 = vunpack.c.l.b16 %v71
  %v275 = vunpack.c.l.b16 %v72
  %v276 = vunpack.c.l.b16 %v73
  %v277 = vunpack.c.l.b16 %v74
  %v278 = vunpack.c.l.b16 %v75
  %v279 = vunpack.c.l.b16 %v76
  %v280 = vunpack.c.l.b16 %v77
  %v281 = vunpack.c.l.b16 %v78
  %v282 = vunpack.c.l.b16 %v79
  %v283 = vunpack.c.l.b16 %v80
  %v284 = vunpack.c.l.b16 %v81
  %v285 = vunpack.c.l.b16 %v82
  %v286 = vunpack.c.l.b16 %v83
  %v287 = vunpack.c.l.b16 %v84
  %v288 = vunpack.c.l.b16 %v85
  %v289 = vunpack.c.l.b16 %v86
  %v290 = vunpack.c.l.b16 %v87
  %v291 = vunpack.c.l.b16 %v88
  %v292 = vunpack.c.l.b16 %v89
  %v293 = vunpack.c.l.b16 %v90
  %v294 = vunpack.c.l.b16 %v91
  %v295 = vunpack.c.l.b16 %v92
  %v296 = vunpack.c.l.b16 %v93
  %v297 = vunpack.c.l.b16 %v94
  %v298 = vunpack.c.l.b16 %v95
  %v299 = vunpack.c.l.b16 %v96
  %v300 = vunpack.c.l.b16 %v97
  %v301 = vunpack.c.l.b16 %v98
  %v302 = vunpack.c.l.b16 %v99
  %v303 = vunpack.c.l.b16 %v100
  %v304 = vunpack.c.l.b16 %v101
  %v305 = vunpack.c.l.b16 %v102
  %v306 = vunpack.c.l.b16 %v103
  %v307 = vunpack.c.l.b16 %v104
  %v308 = vunpack.c.l.b16 %v105
  %v309 = vunpack.c.l.b16 %v106
  %v310 = vunpack.c.l.b16 %v107
  %v311 = vunpack.c.l.b16 %v108
  %v312 = vunpack.c.l.b16 %v109
  %v313 = vunpack.c.l.b16 %v110
  %v314 = vunpack.c.l.b16 %v111
  %v315 = vunpack.c.l.b16 %v112
  %v316 = vunpack.c.l.b16 %v113
  %v317 = vunpack.c.l.b16 %v114
  %v318 = vunpack.c.l.b16 %v115
  %v319 = vunpack.c.l.b16 %v116
  %v320 = vunpack.c.l.b16 %v117
  %v321 = vunpack.c.l.b16 %v118
  %v322 = vunpack.c.l.b16 %v119
  %v323 = vunpack.c.l.b16 %v120
  %v324 = vunpack.c.l.b16 %v121
  %v325 = vunpack.c.l.b16 %v122
  %v326 = vunpack.c.l.b16 %v123
  %v327 = vunpack.c.l.b16 %v124
  %v328 = vunpack.c.l.b16 %v125
  %v329 = vunpack.c.l.b16 %v126
  %v330 = vunpack.c.l.b16 %v127
  %v331 = vunpack.c.l.b16 %v128
  %v332 = vunpack.c.l.b16 %v129
  %v333 = vunpack.c.l.b16 %v130
  %v334 = vunpack.c.l.b16 %v131
  %v335 = vunpack.c.l.b16 %v132
  %v336 = vunpack.c.l.b16 %v133
  %v337 = vunpack.c.l.b16 %v134
  %v338 = vunpack.c.l.b16 %v135
  %v339 = vunpack.c.l.b16 %v136
  %v340 = vunpack.c.l.b16 %v137
  %v341 = vunpack.c.l.b16 %v138
  %v342 = vunpack.c.l.b16 %v139
  %v343 = vunpack.c.l.b16 %v140
  %v344 = vunpack.c.l.b16 %v141
  %v345 = vunpack.c.l.b16 %v142
  %v346 = vunpack.c.l.b16 %v143
  %v347 = vunpack.c.l.b16 %v144
  %v348 = vpack.c.b16 %v251, %v250
  %v349 = vpack.c.b16 %v253, %v252
  %v350 = vpack.c.b16 %v255, %v254
  %v351 = vpack.c.b16 %v257, %v256
  %v352 = vpack.c.b16 %v259, %v258
  %v353 = vpack.c.b16 %v261, %v260
  %v354 = vpack.c.b16 %v263, %v262
  %v355 = vpack.c.b16 %v265, %v264
  %v356 = vpack.c.b16 %v267, %v266
  %v357 = vpack.c.b16 %v269, %v268
  %v358 = vpack.c.b16 %v271, %v270
  %v359 = vpack.c.b16 %v273, %v272
  %v360 = vpack.c.b16 %v275, %v274
  %v361 = vpack.c.b16 %v277, %v276
  %v362 = vpack.c.b16 %v279, %v278
  %v363 = vpack.c.b16 %v281, %v280
  %v364 = vpack.c.b16 %v283, %v282
  %v365 = vpack.c.b16 %v285, %v284
  %v366 = vpack.c.b16 %v287, %v286
  %v367 = vpack.c.b16 %v289, %v288
  %v368 = vpack.c.b16 %v291, %v290
  %v369 = vpack.c.b16 %v293, %v292
  %v370 = vpack.c.b16 %v295, %v294
  %v371 = vpack.c.b16 %v297, %v296
  %v372 = vpack.c.b16 %v299, %v298
  %v373 = vpack.c.b16 %v301, %v300
  %v374 = vpack.c.b16 %v303, %v302
  %v375 = vpack.c.b16 %v305, %v304
  %v376 = vpack.c.b16 %v307, %v306
  %v377 = vpack.c.b16 %v309, %v308
  %v378 = vpack.c.b16 %v311, %v310
  %v379 = vpack.c.b16 %v313, %v312
  %v380 = vpack.c.b16 %v315, %v314
  %v381 = vpack.c.b16 %v317, %v316
  %v382 = vpack.c.b16 %v319, %v318
  %v383 = vpack.c.b16 %v321, %v320
  %v384 = vpack.c.b16 %v323, %v322
  %v385 = vpack.c.b16 %v325, %v324
  %v386 = vpack.c.b16 %v327, %v326
  %v387 = vpack.c.b16 %v329, %v328
  %v388 = vpack.c.b16 %v331, %v330
  %v389 = vpack.c.b16 %v333, %v332
  %v390 = vpack.c.b16 %v335, %v334
  %v391 = vpack.c.b16 %v337, %v336
  %v392 = vpack.c.b16 %v339, %v338
  %v393 = vpack.c.b16 %v341, %v340
  %v394 = vpack.c.b16 %v343, %v342
  %v395 = vpack.c.b16 %v345, %v344
  %v396 = vpack.c.b16 %v347, %v346
  %vm446 = vcmask 130048
  %v448 = vsel %vm446, %v46, 0
  %450 = vmatprep.subr.bf16.mxu0 0
  %451 = vmatpush1.bf16.msra.mxu0 %v355
  %452 = vmatprep.subr.bf16.mxu0 0
  %453 = vmatpush1.bf16.msra.mxu0 %v354
  %454 = vmatprep.subr.bf16.mxu0 0
  %455 = vmatpush1.bf16.msra.mxu0 %v353
  %456 = vmatprep.subr.bf16.mxu0 0
  %457 = vmatpush1.bf16.msra.mxu0 %v352
  %458 = vmatprep.subr.bf16.mxu0 0
  %459 = vmatpush1.bf16.msra.mxu0 %v351
  %460 = vmatprep.subr.bf16.mxu0 0
  %461 = vmatpush1.bf16.msra.mxu0 %v350
  %462 = vmatprep.subr.bf16.mxu0 0
  %463 = vmatpush1.bf16.msra.mxu0 %v349
  %464 = vmatprep.subr.bf16.mxu0 0
  %465 = vmatpush1.bf16.msra.mxu0 %v348
  %466 = vmatprep.subr.bf16.mxu0 0
  %467 = vmatpush2.bf16.msra.mxu0 %v363
  %468 = vmatprep.subr.bf16.mxu0 0
  %469 = vmatpush2.bf16.msra.mxu0 %v362
  %470 = vmatprep.subr.bf16.mxu0 0
  %471 = vmatpush2.bf16.msra.mxu0 %v361
  %472 = vmatprep.subr.bf16.mxu0 0
  %473 = vmatpush2.bf16.msra.mxu0 %v360
  %474 = vmatprep.subr.bf16.mxu0 0
  %475 = vmatpush2.bf16.msra.mxu0 %v359
  %476 = vmatprep.subr.bf16.mxu0 0
  %477 = vmatpush2.bf16.msra.mxu0 %v358
  %478 = vmatprep.subr.bf16.mxu0 0
  %479 = vmatpush2.bf16.msra.mxu0 %v357
  %480 = vmatprep.subr.bf16.mxu0 0
  %481 = vmatpush2.bf16.msra.mxu0 %v356
  %482 = vmatprep.mubr.bf16.mxu0 %v41
  %483 = vmatmul.mubr.bf16.gmra.mxu0 %v40
  %v484 = vpop.f32.mrf.mxu0
  %v485 = vadd.f32 %v150, %v484
  %v486 = vpop.f32.mrf.mxu0
  %v487 = vpop.f32.mrf.mxu0
  %v488 = vpop.f32.mrf.mxu0
  %489 = vdwg.mxu0
  %490 = vmatprep.subr.bf16.mxu0 0
  %491 = vmatpush1.bf16.msra.mxu0 %v371
  %492 = vmatprep.subr.bf16.mxu0 0
  %493 = vmatpush1.bf16.msra.mxu0 %v370
  %494 = vmatprep.subr.bf16.mxu0 0
  %495 = vmatpush1.bf16.msra.mxu0 %v369
  %496 = vmatprep.subr.bf16.mxu0 0
  %497 = vmatpush1.bf16.msra.mxu0 %v368
  %498 = vmatprep.subr.bf16.mxu0 0
  %499 = vmatpush1.bf16.msra.mxu0 %v367
  %500 = vmatprep.subr.bf16.mxu0 0
  %501 = vmatpush1.bf16.msra.mxu0 %v366
  %502 = vmatprep.subr.bf16.mxu0 0
  %503 = vmatpush1.bf16.msra.mxu0 %v365
  %504 = vmatprep.subr.bf16.mxu0 0
  %505 = vmatpush1.bf16.msra.mxu0 %v364
  %506 = vmatprep.subr.bf16.mxu0 0
  %507 = vmatpush2.bf16.msra.mxu0 %v379
  %508 = vmatprep.subr.bf16.mxu0 0
  %509 = vmatpush2.bf16.msra.mxu0 %v378
  %510 = vmatprep.subr.bf16.mxu0 0
  %511 = vmatpush2.bf16.msra.mxu0 %v377
  %512 = vmatprep.subr.bf16.mxu0 0
  %513 = vmatpush2.bf16.msra.mxu0 %v376
  %514 = vmatprep.subr.bf16.mxu0 0
  %515 = vmatpush2.bf16.msra.mxu0 %v375
  %516 = vmatprep.subr.bf16.mxu0 0
  %517 = vmatpush2.bf16.msra.mxu0 %v374
  %518 = vmatprep.subr.bf16.mxu0 0
  %519 = vmatpush2.bf16.msra.mxu0 %v373
  %520 = vmatprep.subr.bf16.mxu0 0
  %521 = vmatpush2.bf16.msra.mxu0 %v372
  %522 = vmatprep.mubr.bf16.mxu0 %v43
  %523 = vmatmul.mubr.bf16.gmra.mxu0 %v42
  %v524 = vpop.f32.mrf.mxu0
  %v525 = vadd.f32 %v485, %v524
  %v526 = vpop.f32.mrf.mxu0
  %v527 = vpop.f32.mrf.mxu0
  %v528 = vpop.f32.mrf.mxu0
  %529 = vdwg.mxu0
  %530 = vmatprep.subr.bf16.mxu0 0
  %531 = vmatpush1.bf16.msra.mxu0 %v387
  %532 = vmatprep.subr.bf16.mxu0 0
  %533 = vmatpush1.bf16.msra.mxu0 %v386
  %534 = vmatprep.subr.bf16.mxu0 0
  %535 = vmatpush1.bf16.msra.mxu0 %v385
  %536 = vmatprep.subr.bf16.mxu0 0
  %537 = vmatpush1.bf16.msra.mxu0 %v384
  %538 = vmatprep.subr.bf16.mxu0 0
  %539 = vmatpush1.bf16.msra.mxu0 %v383
  %540 = vmatprep.subr.bf16.mxu0 0
  %541 = vmatpush1.bf16.msra.mxu0 %v382
  %542 = vmatprep.subr.bf16.mxu0 0
  %543 = vmatpush1.bf16.msra.mxu0 %v381
  %544 = vmatprep.subr.bf16.mxu0 0
  %545 = vmatpush1.bf16.msra.mxu0 %v380
  %546 = vmatprep.subr.bf16.mxu0 0
  %547 = vmatpush2.bf16.msra.mxu0 %v395
  %548 = vmatprep.subr.bf16.mxu0 0
  %549 = vmatpush2.bf16.msra.mxu0 %v394
  %550 = vmatprep.subr.bf16.mxu0 0
  %551 = vmatpush2.bf16.msra.mxu0 %v393
  %552 = vmatprep.subr.bf16.mxu0 0
  %553 = vmatpush2.bf16.msra.mxu0 %v392
  %554 = vmatprep.subr.bf16.mxu0 0
  %555 = vmatpush2.bf16.msra.mxu0 %v391
  %556 = vmatprep.subr.bf16.mxu0 0
  %557 = vmatpush2.bf16.msra.mxu0 %v390
  %558 = vmatprep.subr.bf16.mxu0 0
  %559 = vmatpush2.bf16.msra.mxu0 %v389
  %560 = vmatprep.subr.bf16.mxu0 0
  %561 = vmatpush2.bf16.msra.mxu0 %v388
  %562 = vmatprep.mubr.bf16.mxu0 %v45
  %563 = vmatmul.mubr.bf16.gmra.mxu0 %v44
  %v564 = vpop.f32.mrf.mxu0
  %v565 = vadd.f32 %v525, %v564
  %v566 = vpop.f32.mrf.mxu0
  %v567 = vpop.f32.mrf.mxu0
  %v568 = vpop.f32.mrf.mxu0
  %569 = vdwg.mxu0
  %570 = vmatprep.subr.bf16.mxu0 0
  %571 = vmatpush1.bf16.msra.mxu0 0
  %572 = vmatprep.subr.bf16.mxu0 0
  %573 = vmatpush1.bf16.msra.mxu0 0
  %574 = vmatprep.subr.bf16.mxu0 0
  %575 = vmatpush1.bf16.msra.mxu0 0
  %576 = vmatprep.subr.bf16.mxu0 0
  %577 = vmatpush1.bf16.msra.mxu0 0
  %578 = vmatprep.subr.bf16.mxu0 0
  %579 = vmatpush1.bf16.msra.mxu0 0
  %580 = vmatprep.subr.bf16.mxu0 0
  %581 = vmatpush1.bf16.msra.mxu0 0
  %582 = vmatprep.subr.bf16.mxu0 0
  %583 = vmatpush1.bf16.msra.mxu0 0
  %584 = vmatprep.subr.bf16.mxu0 0
  %585 = vmatpush1.bf16.msra.mxu0 %v396
  %586 = vmatprep.subr.bf16.mxu0 0
  %587 = vmatpush2.bf16.msra.mxu0 0
  %588 = vmatprep.subr.bf16.mxu0 0
  %589 = vmatpush2.bf16.msra.mxu0 0
  %590 = vmatprep.subr.bf16.mxu0 0
  %591 = vmatpush2.bf16.msra.mxu0 0
  %592 = vmatprep.subr.bf16.mxu0 0
  %593 = vmatpush2.bf16.msra.mxu0 0
  %594 = vmatprep.subr.bf16.mxu0 0
  %595 = vmatpush2.bf16.msra.mxu0 0
  %596 = vmatprep.subr.bf16.mxu0 0
  %597 = vmatpush2.bf16.msra.mxu0 0
  %598 = vmatprep.subr.bf16.mxu0 0
  %599 = vmatpush2.bf16.msra.mxu0 0
  %600 = vmatprep.subr.bf16.mxu0 0
  %601 = vmatpush2.bf16.msra.mxu0 0
  %602 = vmatprep.mubr.bf16.mxu0 0
  %603 = vmatmul.mubr.bf16.gmra.mxu0 %v448
  %v604 = vpop.f32.mrf.mxu0
  %v605 = vadd.f32 %v565, %v604
  %v606 = vpop.f32.mrf.mxu0
  %v607 = vpop.f32.mrf.mxu0
  %v608 = vpop.f32.mrf.mxu0
  %609 = vdwg.mxu0
  %v610 = vmax.f32 %v605, 0.0
  %v611 = vpack.c.bf16 %v610, %v610
  %v612 = vld [vmem:[%s3] sm:$0xf]
  %v613 = vld [vmem:[%s3 + $0x4] sm:$0xf]
  %v614 = vld [vmem:[%s3 + $0x8] sm:$0xf]
  %v615 = vld [vmem:[%s3 + $0xc] sm:$0xf]
  %v616 = vld [vmem:[%s3 + $0x10] sm:$0xf]
  %v617 = vld [vmem:[%s3 + $0x14] sm:$0xf]
  %v618 = vld [vmem:[%s3 + $0x18] sm:$0xf]
  %v619 = vld [vmem:[%s3 + $0x1c] sm:$0xf]
  %v620 = vld [vmem:[%s4] sm:$0x1]
  %v622 = vlaneseq
  %v623 = vshrl.u32 %v622, 7
  %v624 = vsub.s32 0, %v623
  %v625 = vrot.slane %v620, %v624
  %v635 = vunpack.c.l.b16 %v612
  %v636 = vunpack.c.l.b16 %v613
  %v637 = vunpack.c.l.b16 %v614
  %v638 = vunpack.c.l.b16 %v615
  %v639 = vunpack.c.l.b16 %v616
  %v640 = vunpack.c.l.b16 %v617
  %v641 = vunpack.c.l.b16 %v618
  %v642 = vunpack.c.l.b16 %v619
  %v643 = vpack.c.b16 %v636, %v635
  %v644 = vpack.c.b16 %v638, %v637
  %v645 = vpack.c.b16 %v640, %v639
  %v646 = vpack.c.b16 %v642, %v641
  %vm651 = vcmask 523264
  %v653 = vsel %vm651, %v611, 0
  %655 = vmatprep.subr.bf16.mxu0 0
  %656 = vmatpush1.bf16.msra.mxu0 0
  %657 = vmatprep.subr.bf16.mxu0 0
  %658 = vmatpush1.bf16.msra.mxu0 0
  %659 = vmatprep.subr.bf16.mxu0 0
  %660 = vmatpush1.bf16.msra.mxu0 0
  %661 = vmatprep.subr.bf16.mxu0 0
  %662 = vmatpush1.bf16.msra.mxu0 0
  %663 = vmatprep.subr.bf16.mxu0 0
  %664 = vmatpush1.bf16.msra.mxu0 %v646
  %665 = vmatprep.subr.bf16.mxu0 0
  %666 = vmatpush1.bf16.msra.mxu0 %v645
  %667 = vmatprep.subr.bf16.mxu0 0
  %668 = vmatpush1.bf16.msra.mxu0 %v644
  %669 = vmatprep.subr.bf16.mxu0 0
  %670 = vmatpush1.bf16.msra.mxu0 %v643
  %671 = vmatprep.subr.bf16.mxu0 0
  %672 = vmatpush2.bf16.msra.mxu0 0
  %673 = vmatprep.subr.bf16.mxu0 0
  %674 = vmatpush2.bf16.msra.mxu0 0
  %675 = vmatprep.subr.bf16.mxu0 0
  %676 = vmatpush2.bf16.msra.mxu0 0
  %677 = vmatprep.subr.bf16.mxu0 0
  %678 = vmatpush2.bf16.msra.mxu0 0
  %679 = vmatprep.subr.bf16.mxu0 0
  %680 = vmatpush2.bf16.msra.mxu0 0
  %681 = vmatprep.subr.bf16.mxu0 0
  %682 = vmatpush2.bf16.msra.mxu0 0
  %683 = vmatprep.subr.bf16.mxu0 0
  %684 = vmatpush2.bf16.msra.mxu0 0
  %685 = vmatprep.subr.bf16.mxu0 0
  %686 = vmatpush2.bf16.msra.mxu0 0
  %687 = vmatprep.mubr.bf16.mxu0 0
  %688 = vmatmul.mubr.bf16.gmra.mxu0 %v653
  %v689 = vpop.f32.mrf.mxu0
  %v690 = vadd.f32 %v625, %v689
  %v691 = vpop.f32.mrf.mxu0
  %v692 = vpop.f32.mrf.mxu0
  %v693 = vpop.f32.mrf.mxu0
  %694 = vdwg.mxu0
  %v695 = vmax.f32 %v690, 0.0
  %v696 = vpack.c.bf16 %v695, %v695
  %v697 = vld [vmem:[%s5] sm:$0xf]
  %v698 = vld [vmem:[%s5 + $0x4] sm:$0xf]
  %v699 = vld [vmem:[%s5 + $0x8] sm:$0xf]
  %v700 = vld [vmem:[%s5 + $0xc] sm:$0xf]
  %v701 = vld [vmem:[%s5 + $0x10] sm:$0xf]
  %v702 = vld [vmem:[%s5 + $0x14] sm:$0xf]
  %v703 = vld [vmem:[%s5 + $0x18] sm:$0xf]
  %v704 = vld [vmem:[%s5 + $0x1c] sm:$0xf]
  %v705 = vld [vmem:[%s6] sm:$0x1]
  %v707 = vlaneseq
  %v708 = vshrl.u32 %v707, 7
  %v709 = vsub.s32 0, %v708
  %v710 = vrot.slane %v705, %v709
  %v720 = vunpack.c.l.b16 %v697
  %v721 = vunpack.c.l.b16 %v698
  %v722 = vunpack.c.l.b16 %v699
  %v723 = vunpack.c.l.b16 %v700
  %v724 = vunpack.c.l.b16 %v701
  %v725 = vunpack.c.l.b16 %v702
  %v726 = vunpack.c.l.b16 %v703
  %v727 = vunpack.c.l.b16 %v704
  %v728 = vpack.c.b16 %v721, %v720
  %v729 = vpack.c.b16 %v723, %v722
  %v730 = vpack.c.b16 %v725, %v724
  %v731 = vpack.c.b16 %v727, %v726
  %v737 = vsel %vm651, %v696, 0
  %739 = vmatprep.subr.bf16.mxu0 0
  %740 = vmatpush1.bf16.msra.mxu0 0
  %741 = vmatprep.subr.bf16.mxu0 0
  %742 = vmatpush1.bf16.msra.mxu0 0
  %743 = vmatprep.subr.bf16.mxu0 0
  %744 = vmatpush1.bf16.msra.mxu0 0
  %745 = vmatprep.subr.bf16.mxu0 0
  %746 = vmatpush1.bf16.msra.mxu0 0
  %747 = vmatprep.subr.bf16.mxu0 0
  %748 = vmatpush1.bf16.msra.mxu0 %v731
  %749 = vmatprep.subr.bf16.mxu0 0
  %750 = vmatpush1.bf16.msra.mxu0 %v730
  %751 = vmatprep.subr.bf16.mxu0 0
  %752 = vmatpush1.bf16.msra.mxu0 %v729
  %753 = vmatprep.subr.bf16.mxu0 0
  %754 = vmatpush1.bf16.msra.mxu0 %v728
  %755 = vmatprep.subr.bf16.mxu0 0
  %756 = vmatpush2.bf16.msra.mxu0 0
  %757 = vmatprep.subr.bf16.mxu0 0
  %758 = vmatpush2.bf16.msra.mxu0 0
  %759 = vmatprep.subr.bf16.mxu0 0
  %760 = vmatpush2.bf16.msra.mxu0 0
  %761 = vmatprep.subr.bf16.mxu0 0
  %762 = vmatpush2.bf16.msra.mxu0 0
  %763 = vmatprep.subr.bf16.mxu0 0
  %764 = vmatpush2.bf16.msra.mxu0 0
  %765 = vmatprep.subr.bf16.mxu0 0
  %766 = vmatpush2.bf16.msra.mxu0 0
  %767 = vmatprep.subr.bf16.mxu0 0
  %768 = vmatpush2.bf16.msra.mxu0 0
  %769 = vmatprep.subr.bf16.mxu0 0
  %770 = vmatpush2.bf16.msra.mxu0 0
  %771 = vmatprep.mubr.bf16.mxu0 0
  %772 = vmatmul.mubr.bf16.gmra.mxu0 %v737
  %v773 = vpop.f32.mrf.mxu0
  %v774 = vadd.f32 %v710, %v773
  %v775 = vpop.f32.mrf.mxu0
  %v776 = vpop.f32.mrf.mxu0
  %v777 = vpop.f32.mrf.mxu0
  %778 = vdwg.mxu0
  %v779 = vmax.f32 %v774, 0.0
  %v780 = vpack.c.bf16 %v779, %v779
  %v781 = vld [vmem:[%s7] sm:$0xf]
  %v782 = vld [vmem:[%s7 + $0x4] sm:$0xf]
  %v783 = vld [vmem:[%s7 + $0x8] sm:$0xf]
  %v784 = vld [vmem:[%s7 + $0xc] sm:$0xf]
  %v785 = vld [vmem:[%s7 + $0x10] sm:$0xf]
  %v786 = vld [vmem:[%s7 + $0x14] sm:$0xf]
  %v787 = vld [vmem:[%s7 + $0x18] sm:$0xf]
  %v788 = vld [vmem:[%s7 + $0x1c] sm:$0xf]
  %v789 = vld [vmem:[%s8] sm:$0x1]
  %v791 = vlaneseq
  %v792 = vshrl.u32 %v791, 7
  %v793 = vsub.s32 0, %v792
  %v794 = vrot.slane %v789, %v793
  %v804 = vunpack.c.l.b16 %v781
  %v805 = vunpack.c.l.b16 %v782
  %v806 = vunpack.c.l.b16 %v783
  %v807 = vunpack.c.l.b16 %v784
  %v808 = vunpack.c.l.b16 %v785
  %v809 = vunpack.c.l.b16 %v786
  %v810 = vunpack.c.l.b16 %v787
  %v811 = vunpack.c.l.b16 %v788
  %v812 = vpack.c.b16 %v805, %v804
  %v813 = vpack.c.b16 %v807, %v806
  %v814 = vpack.c.b16 %v809, %v808
  %v815 = vpack.c.b16 %v811, %v810
  %v821 = vsel %vm651, %v780, 0
  %823 = vmatprep.subr.bf16.mxu0 0
  %824 = vmatpush1.bf16.msra.mxu0 0
  %825 = vmatprep.subr.bf16.mxu0 0
  %826 = vmatpush1.bf16.msra.mxu0 0
  %827 = vmatprep.subr.bf16.mxu0 0
  %828 = vmatpush1.bf16.msra.mxu0 0
  %829 = vmatprep.subr.bf16.mxu0 0
  %830 = vmatpush1.bf16.msra.mxu0 0
  %831 = vmatprep.subr.bf16.mxu0 0
  %832 = vmatpush1.bf16.msra.mxu0 %v815
  %833 = vmatprep.subr.bf16.mxu0 0
  %834 = vmatpush1.bf16.msra.mxu0 %v814
  %835 = vmatprep.subr.bf16.mxu0 0
  %836 = vmatpush1.bf16.msra.mxu0 %v813
  %837 = vmatprep.subr.bf16.mxu0 0
  %838 = vmatpush1.bf16.msra.mxu0 %v812
  %839 = vmatprep.subr.bf16.mxu0 0
  %840 = vmatpush2.bf16.msra.mxu0 0
  %841 = vmatprep.subr.bf16.mxu0 0
  %842 = vmatpush2.bf16.msra.mxu0 0
  %843 = vmatprep.subr.bf16.mxu0 0
  %844 = vmatpush2.bf16.msra.mxu0 0
  %845 = vmatprep.subr.bf16.mxu0 0
  %846 = vmatpush2.bf16.msra.mxu0 0
  %847 = vmatprep.subr.bf16.mxu0 0
  %848 = vmatpush2.bf16.msra.mxu0 0
  %849 = vmatprep.subr.bf16.mxu0 0
  %850 = vmatpush2.bf16.msra.mxu0 0
  %851 = vmatprep.subr.bf16.mxu0 0
  %852 = vmatpush2.bf16.msra.mxu0 0
  %853 = vmatprep.subr.bf16.mxu0 0
  %854 = vmatpush2.bf16.msra.mxu0 0
  %855 = vmatprep.mubr.bf16.mxu0 0
  %856 = vmatmul.mubr.bf16.gmra.mxu0 %v821
  %v857 = vpop.f32.mrf.mxu0
  %v858 = vadd.f32 %v794, %v857
  %v859 = vpop.f32.mrf.mxu0
  %v860 = vpop.f32.mrf.mxu0
  %v861 = vpop.f32.mrf.mxu0
  %862 = vdwg.mxu0
  %863 = vmax.xlane.f32.xlu0 %v858
  %v864 = vpop.xlane.xlu0 %863
  %v865 = vsub.f32 %v858, %v864
  %v866 = vmul.f32 %v865, 1.442695
  %v867 = vpow.pop %v866
  %868 = vadd.xlane.f32.xlu0 %v867
  %v869 = vpop.xlane.xlu0 %868
  %v870 = vlog2.pop %v869
  %v871 = vmul.f32 %v870, 0.6931472
  %v872 = vsub.f32 %v865, %v871
  %v873 = vpack.c.bf16 %v872, %v872
  %874 = vst [vmem:[%s9] sm:$0xf] %v873
  // Predicated region
  $region38: #{mlp_forward.1} parent=0 // pred_check
    _
  $region39: #{mlp_forward.1} parent=0 // pred_check_branch
    %876 = sbr.rel (0) target = $region41
  $region40: #{mlp_forward.1} parent=0 // pred_region
    _
  $region41: #{mlp_forward.1} parent=0 // pred_fallthru
    _
  // Predicated region
  $region42: #{mlp_forward.1} parent=0 // pred_check
    _
  $region43: #{mlp_forward.1} parent=0 // pred_check_branch
    %878 = sbr.rel (0) target = $region45
  $region44: #{mlp_forward.1} parent=0 // pred_region
    _
  $region45: #{mlp_forward.1} parent=0 // pred_fallthru
    _

</llo_original>
